<compile_context>
chip_gen: v7x
topology: tpu7x:2x2x1
jax: 0.10.0
libtpu: 0.0.40
codegen_flags: <defaults>
</compile_context>

<pallas_src>
import jax
import jax.numpy as jnp
from jax.experimental import pallas as pl
from jax.experimental.pallas import tpu as pltpu


def swiglu_kernel(x_ref, w_ref, b_ref, beta_ref, o_ref):
    # x_ref:    (tm, size)      activation tile, native dtype
    # w_ref:    (2, size, tn)   bf16 fused weight tile (plane 0 = gate, 1 = lin)
    # b_ref:    (2, 1, tn)      f32 fused bias tile
    # beta_ref: (1,)            f32 scalar, in SMEM
    # o_ref:    (tm, tn)        output tile (x dtype)
    x = x_ref[...].astype(jnp.bfloat16)          # in-kernel cast (cheap pack op)

    gate = jnp.dot(x, w_ref[0], preferred_element_type=jnp.float32) + b_ref[0]
    lin = jnp.dot(x, w_ref[1], preferred_element_type=jnp.float32) + b_ref[1]

    beta = beta_ref[0]                           # free sreg read from SMEM
    swish_gate = gate * jax.nn.sigmoid(beta * gate)
    o_ref[...] = (swish_gate * lin).astype(o_ref.dtype)


def _round_up(v, m):
    return ((v + m - 1) // m) * m


def _vmem_limit_bytes():
    """Per-generation scoped VMEM limit with headroom for Mosaic scratch."""
    cap = None
    try:
        cap = getattr(pltpu.get_tpu_info(), "vmem_capacity_bytes", None)
    except Exception:
        cap = None
    if not cap:
        cap = 64 * 1024 * 1024  # conservative: v7x per-TC VMEM
    # v7x (64 MiB)  -> 56 MiB; v5e/v6e (128 MiB) -> 100 MiB.
    return max(32 * 1024 * 1024, min(100 * 1024 * 1024, int(cap) - 8 * 1024 * 1024))


def prepare_swiglu_params(wg, bg, w, b):
    """One-time parameter prep (hoisted out of the forward pass).

    wg/w: (size, size) already transposed so the kernel computes x @ W.
    Returns a (2, size, size) bf16 fused weight and (2, 1, size) f32 bias.
    """
    size = wg.shape[0]
    wcat = jnp.stack([wg, w], axis=0).astype(jnp.bfloat16)            # (2, size, size)
    bcat = jnp.stack([bg, b], axis=0).reshape(2, 1, size).astype(jnp.float32)
    return wcat, bcat


def swiglu(x, wcat, bcat, beta, *, tm=256, tn=512):
    """x: (..., size). wcat: (2, size, size) bf16; bcat: (2, 1, size) f32; beta: (1,)."""
    orig_shape = x.shape
    size = orig_shape[-1]
    out_dtype = x.dtype

    x2 = x.reshape(-1, size)
    M = x2.shape[0]

    # N (output-column) tile: full width when small, else a multiple of 128
    # (256/512 keeps the 2x256x256 MXUs on v6e/v7x fully occupied).
    if size <= tn:
        tn_eff = size
    else:
        tn_eff = max(128, (tn // 128) * 128)
    num_n = pl.cdiv(size, tn_eff)

    # M (row) tile: large to amortize per-grid-step overhead, multiple of 8.
    tm_eff = _round_up(min(tm, _round_up(M, 8)), 8)
    # Guarantee >= 2 grid steps so v7x megacore sharding has work for both TCs.
    if num_n == 1 and pl.cdiv(M, tm_eff) < 2 and M > 8:
        tm_eff = _round_up(pl.cdiv(M, 2), 8)
    num_m = pl.cdiv(M, tm_eff)

    grid = (num_m, num_n)
    beta1 = jnp.asarray(beta, jnp.float32).reshape(1)

    cost = pl.CostEstimate(
        flops=4 * M * size * size + 4 * M * size,
        transcendentals=M * size,
        bytes_accessed=(x2.size * x2.dtype.itemsize
                        + wcat.size * wcat.dtype.itemsize
                        + bcat.size * bcat.dtype.itemsize
                        + M * size * jnp.dtype(out_dtype).itemsize),
    )

    out = pl.pallas_call(
        swiglu_kernel,
        out_shape=jax.ShapeDtypeStruct((M, size), out_dtype),
        grid_spec=pltpu.PrefetchScalarGridSpec(
            num_scalar_prefetch=0,
            grid=grid,
            in_specs=[
                pl.BlockSpec((tm_eff, size), lambda i, n: (i, 0)),        # x rows (native dtype)
                pl.BlockSpec((2, size, tn_eff), lambda i, n: (0, 0, n)),  # streamed fused weight
                pl.BlockSpec((2, 1, tn_eff), lambda i, n: (0, 0, n)),     # fused bias
                pl.BlockSpec(memory_space=pltpu.MemorySpace.SMEM),        # beta scalar
            ],
            out_specs=pl.BlockSpec((tm_eff, tn_eff), lambda i, n: (i, n)),
        ),
        compiler_params=pltpu.CompilerParams(
            dimension_semantics=("parallel", "parallel"),  # megacore shards grid on v7x
            vmem_limit_bytes=_vmem_limit_bytes(),
        ),
        cost_estimate=cost,
    )(x2, wcat, bcat, beta1)

    return out.reshape(orig_shape)


def swiglu_ref(x, wg, bg, w, b, beta):
    g = x @ wg + bg
    l = x @ w + b
    return (g * jax.nn.sigmoid(beta * g)) * l


if __name__ == "__main__":
    size = 32

    key = jax.random.PRNGKey(0)
    kx, kwg, kbg, kw, kb, kx2 = jax.random.split(key, 6)

    # Deterministic nn.Linear-like init; weights stored pre-transposed so the
    # kernel computes x @ W (for a real PyTorch module pass W.T).
    bound = 1.0 / jnp.sqrt(size)
    wg = jax.random.uniform(kwg, (size, size), jnp.float32, -bound, bound)
    bg = jax.random.uniform(kbg, (size,), jnp.float32, -bound, bound)
    w = jax.random.uniform(kw, (size, size), jnp.float32, -bound, bound)
    b = jax.random.uniform(kb, (size,), jnp.float32, -bound, bound)
    beta = jnp.ones((1,), dtype=jnp.float32)  # nn.Parameter(torch.ones(1))

    # One-time fused-parameter prep (hoisted out of the forward pass).
    wcat, bcat = prepare_swiglu_params(wg, bg, w, b)
    wcat, bcat = jax.block_until_ready((wcat, bcat))

    # Test 1: canonical small shape (batch=2, seq=8, size=32).
    x = jax.random.normal(kx, (2, 8, size), dtype=jnp.float32)
    out = swiglu(x, wcat, bcat, beta)
    jax.block_until_ready(out)
    ref = swiglu_ref(x, wg, bg, w, b, beta)
    assert out.shape == x.shape
    # bf16 matmul inputs -> slightly looser tolerance vs the f32 reference.
    assert jnp.allclose(out, ref, atol=2e-2, rtol=2e-2), "mismatch vs reference (test 1)"

    # Test 2: row count not a multiple of the tile -> exercises Pallas' masked
    # partial tail block (no explicit padding pass anymore).
    x2 = jax.random.normal(kx2, (3, 7, size), dtype=jnp.float32)
    out2 = swiglu(x2, wcat, bcat, beta)
    jax.block_until_ready(out2)
    ref2 = swiglu_ref(x2, wg, bg, w, b, beta)
    assert out2.shape == x2.shape
    assert jnp.allclose(out2, ref2, atol=2e-2, rtol=2e-2), "mismatch vs reference (test 2)"

    print("KERNEL_OK")
</pallas_src>

<mosaic_0001>
module attributes {stable_mosaic.version = 11 : i64} {
  func.func @swiglu_kernel(%arg0: i32, %arg1: i32, %arg2: memref<8x32xf32, #tpu.memory_space<vmem>>, %arg3: memref<2x32x32xbf16, #tpu.memory_space<vmem>>, %arg4: memref<2x1x32xf32, #tpu.memory_space<vmem>>, %arg5: memref<1xf32, #tpu.memory_space<smem>>, %arg6: memref<8x32xf32, #tpu.memory_space<vmem>>) attributes {dimension_semantics = [#tpu.dimension_semantics<parallel>, #tpu.dimension_semantics<parallel>], iteration_bounds = array<i64: 2, 1>, scalar_prefetch = 0 : i64, scratch_operands = 0 : i64, tpu.core_type = #tpu.core_type<tc>, window_params = [{transform_indices = @transform_0, window_bounds = array<i64: 8, 32>}, {transform_indices = @transform_1, window_bounds = array<i64: 2, 32, 32>}, {transform_indices = @transform_2, window_bounds = array<i64: 2, 1, 32>}, {transform_indices = @transform_3, window_bounds = array<i64: 1>}, {transform_indices = @transform_4, window_bounds = array<i64: 8, 32>}]} {
    %c0 = arith.constant 0 : index
    %c0_0 = arith.constant 0 : index
    %0 = vector.load %arg2[%c0, %c0_0] : memref<8x32xf32, #tpu.memory_space<vmem>>, vector<8x32xf32>
    %1 = arith.truncf %0 : vector<8x32xf32> to vector<8x32xbf16>
    %c0_1 = arith.constant 0 : index
    %c0_2 = arith.constant 0 : index
    %c0_3 = arith.constant 0 : index
    %2 = vector.load %arg3[%c0_1, %c0_2, %c0_3] : memref<2x32x32xbf16, #tpu.memory_space<vmem>>, vector<1x32x32xbf16>
    %3 = vector.shape_cast %2 : vector<1x32x32xbf16> to vector<32x32xbf16>
    %cst = arith.constant dense<0.000000e+00> : vector<8x32xf32>
    %4 = tpu.matmul %1, %3, %cst {dimension_numbers = #tpu.dot_dimension_numbers<[1], [0], [0], [1], [0, 0, 1, 1], [], []>} : vector<8x32xbf16>, vector<32x32xbf16>, vector<8x32xf32> -> vector<8x32xf32>
    %c0_4 = arith.constant 0 : index
    %c0_5 = arith.constant 0 : index
    %c0_6 = arith.constant 0 : index
    %5 = vector.load %arg4[%c0_4, %c0_5, %c0_6] : memref<2x1x32xf32, #tpu.memory_space<vmem>>, vector<1x1x32xf32>
    %6 = vector.shape_cast %5 : vector<1x1x32xf32> to vector<1x32xf32>
    %7 = vector.broadcast %6 : vector<1x32xf32> to vector<8x32xf32>
    %8 = arith.addf %4, %7 : vector<8x32xf32>
    %c1 = arith.constant 1 : index
    %c0_7 = arith.constant 0 : index
    %c0_8 = arith.constant 0 : index
    %9 = vector.load %arg3[%c1, %c0_7, %c0_8] : memref<2x32x32xbf16, #tpu.memory_space<vmem>>, vector<1x32x32xbf16>
    %10 = vector.shape_cast %9 : vector<1x32x32xbf16> to vector<32x32xbf16>
    %cst_9 = arith.constant dense<0.000000e+00> : vector<8x32xf32>
    %11 = tpu.matmul %1, %10, %cst_9 {dimension_numbers = #tpu.dot_dimension_numbers<[1], [0], [0], [1], [0, 0, 1, 1], [], []>} : vector<8x32xbf16>, vector<32x32xbf16>, vector<8x32xf32> -> vector<8x32xf32>
    %c1_10 = arith.constant 1 : index
    %c0_11 = arith.constant 0 : index
    %c0_12 = arith.constant 0 : index
    %12 = vector.load %arg4[%c1_10, %c0_11, %c0_12] : memref<2x1x32xf32, #tpu.memory_space<vmem>>, vector<1x1x32xf32>
    %13 = vector.shape_cast %12 : vector<1x1x32xf32> to vector<1x32xf32>
    %14 = vector.broadcast %13 : vector<1x32xf32> to vector<8x32xf32>
    %15 = arith.addf %11, %14 : vector<8x32xf32>
    %c0_13 = arith.constant 0 : index
    %16 = memref.load %arg5[%c0_13] : memref<1xf32, #tpu.memory_space<smem>>
    %17 = vector.broadcast %16 : f32 to vector<8x32xf32>
    %18 = arith.mulf %17, %8 : vector<8x32xf32>
    %19 = arith.negf %18 : vector<8x32xf32>
    %20 = math.exp %19 : vector<8x32xf32>
    %cst_14 = arith.constant 1.000000e+00 : f32
    %21 = vector.broadcast %cst_14 : f32 to vector<8x32xf32>
    %22 = arith.addf %21, %20 : vector<8x32xf32>
    %23 = arith.divf %21, %22 : vector<8x32xf32>
    %24 = arith.mulf %8, %23 : vector<8x32xf32>
    %25 = arith.mulf %24, %15 : vector<8x32xf32>
    %c0_15 = arith.constant 0 : index
    %c0_16 = arith.constant 0 : index
    %26 = vector.load %arg6[%c0_15, %c0_16] : memref<8x32xf32, #tpu.memory_space<vmem>>, vector<8x32xf32>
    tpu.vector_store %arg6[%c0_15, %c0_16], %25 {strides = array<i32>} : memref<8x32xf32, #tpu.memory_space<vmem>>, vector<8x32xf32>,
    return
  }
  func.func @transform_0(%arg0: i32, %arg1: i32) -> (i32, i32) {
    %c0_i32 = arith.constant 0 : i32
    %c0_i32_0 = arith.constant 0 : i32
    return %arg0, %c0_i32 : i32, i32
  }
  func.func @transform_1(%arg0: i32, %arg1: i32) -> (i32, i32, i32) {
    %c0_i32 = arith.constant 0 : i32
    %c0_i32_0 = arith.constant 0 : i32
    %c0_i32_1 = arith.constant 0 : i32
    return %c0_i32, %c0_i32_0, %arg1 : i32, i32, i32
  }
  func.func @transform_2(%arg0: i32, %arg1: i32) -> (i32, i32, i32) {
    %c0_i32 = arith.constant 0 : i32
    %c0_i32_0 = arith.constant 0 : i32
    %c0_i32_1 = arith.constant 0 : i32
    return %c0_i32, %c0_i32_0, %arg1 : i32, i32, i32
  }
  func.func @transform_3(%arg0: i32, %arg1: i32) -> i32 {
    %c0_i32 = arith.constant 0 : i32
    %c0_i32_0 = arith.constant 0 : i32
    return %c0_i32 : i32
  }
  func.func @transform_4(%arg0: i32, %arg1: i32) -> (i32, i32) {
    %c0_i32 = arith.constant 0 : i32
    return %arg0, %arg1 : i32, i32
  }
}

</mosaic_0001>

<llo_original>
// kernel: tpu_custom_call.1
$region0: #{tpu_custom_call.1}
  #allocation0 [shape = 'u32[]', space=smem, size = 0x4, offset = 0x4, fixed_abs, tag = 'smem constant byte address 0x4 - core index']
  #allocation1 [shape = 'u32[144,128]{1,0:T(1,128)}', space=vmem, size = 0x12000, scoped, tag = 'internal scratch']
  #allocation2 [shape = 'f32[1]{0:T(128)S(6)}', space=smem, size = 0x200, scoped, tag = 'scoped memory for tpu_custom_call.1']
  %s0 = inlined_call_operand.hbm [shape: f32[16,32], index: 0, kind: input, shape index: {}]
  %s1 = inlined_call_operand.hbm [shape: bf16[2,32,32], index: 1, kind: input, shape index: {}]
  %s2 = inlined_call_operand.vmem [shape: f32[2,1,32], index: 2, kind: input, shape index: {}]
  %s3 = inlined_call_operand.<no memory space> [shape: f32[1], index: 3, kind: input, shape index: {}]
  %s4 = inlined_call_operand.hbm [shape: f32[16,32], index: 4, kind: output, shape index: {}]
  %s5 = sld [smem:[#allocation0]]
  $region57: #{tpu_custom_call.1} parent=0
    _
  %s7 = ssub.s32 1, %s5
  %s8 = scalar_select 0, %s7, %s5
  %9 = sst [smem:[#allocation2]] %s3
  $region1: #{tpu_custom_call.1} parent=0
    #allocation3 [shape = 'u8[8192]{0}', space=vmem, size = 0x2000, scoped, tag = 'input window, operand 0']
    #allocation4 [shape = 's32[2]{0}', space=sflag, size = 0x8, scoped, tag = 'scoped memory for tpu_custom_call.1']
    #allocation5 [shape = 's32[2]{0}', space=sflag, size = 0x8, scoped, tag = 'scoped memory for tpu_custom_call.1']
    #allocation6 [shape = 'u8[16384]{0}', space=vmem, size = 0x4000, scoped, tag = 'input window, operand 1, single buffered']
    #allocation7 [shape = 's32[1]{0}', space=sflag, size = 0x4, scoped, tag = 'scoped memory for tpu_custom_call.1']
    #allocation8 [shape = 'u8[8192]{0}', space=vmem, size = 0x2000, scoped, tag = 'output window, operand 0']
    %10 = vsyncpa [#allocation4], 0
    %s11 = scalar_lea.sflag [#allocation4], 1
    %12 = vsyncpa %s11, 0
    %13 = vsyncpa [#allocation7], 0
    %14 = vsyncpa [#allocation5], 0
    %s15 = scalar_lea.sflag [#allocation5], 1
    %16 = vsyncpa %s15, 0
    loop: start=0, step=1, limit=4
    $region2: #{tpu_custom_call.1} parent=1 // loop_pre_header
      _
    $region3: #{tpu_custom_call.1} parent=1 // loop_header
      %s18 = sphi 0, %s22
      %p19 = scmp.ge.s32.totalorder %s18, 4
      %s25 = sphi 0, %s37
      %s26 = sphi 0, %s33
      %s27 = sphi 0, %s25
      %s28 = sphi 0, %s26
      %s29 = sphi 0, %s27
      %s30 = sphi 0, %s28
      %s40 = sphi 0, %s42
      %s43 = sphi 0, %s40
      %s44 = sphi 0, %s43
      %s60 = sphi 0, %s44
      %s66 = sphi 0, %s68
      %s69 = sphi 0, %s66
      %s70 = sphi 0, %s69
      %s86 = sphi 0, %s70
      %s92 = sphi 0, %s94
      %s95 = sphi 0, %s92
      %s96 = sphi 0, %s95
      %s112 = sphi 0, %s96
      %s116 = sphi 0, %s116
      %s118 = sphi 0, %s116
      %s119 = sphi 0, %s118
      %s133 = sphi 0, %s119
      %s141 = sphi 0, %s143
      %s144 = sphi 0, %s141
      %s145 = sphi 0, %s144
      %s161 = sphi 0, %s145
    $region4: #{tpu_custom_call.1} parent=1 // loop_header_branch
      %21 = sbr.rel (%p19) target = $region8
    $region5: #{tpu_custom_call.1} parent=1 // loop_body
      %s23 = ssub.s32 %s18, 1
      %s24 = ssub.s32 %s18, 2
      %s31 = sadd.s32 1, %s26
      %p32 = scmp.ge.s32.totalorder %s31, 1
      %s33 = scalar_select %p32, 0, %s31
      %s34 = sadd.s32 1, %s25
      %s35 = scalar_select %p32, %s34, %s25
      %p36 = scmp.ge.s32.totalorder %s35, 2
      %s37 = scalar_select %p36, 0, %s35
      %s38 = ssub.s32 %s25, %s37
      %p39 = scmp.eq.s32.totalorder %s38, 0
      %s41 = sadd.s32 %s40, 1
      %s42 = scalar_select %p39, %s40, %s41
      %p45 = pneg %p39
      %p46 = scmp.eq.s32.totalorder %s18, 1
      %p47 = por %p45, %p46
      %p48 = scmp.ne.s32.totalorder %s40, %s43
      %p49 = scmp.eq.s32.totalorder %s18, 0
      %p50 = por %p48, %p49
      %p51 = scmp.ne.s32.totalorder %s40, %s43
      %p52 = scmp.eq.s32.totalorder %s23, 1
      %p53 = por %p51, %p52
      %p54 = scmp.ne.s32.totalorder %s43, %s44
      %p55 = scmp.eq.s32.totalorder %s23, 0
      %p56 = por %p54, %p55
      %p57 = scmp.ne.s32.totalorder %s43, %s44
      %p58 = scmp.eq.s32.totalorder %s24, 1
      %p59 = por %p57, %p58
      %p61 = scmp.ne.s32.totalorder %s44, %s60
      %p62 = scmp.eq.s32.totalorder %s24, 0
      %p63 = por %p61, %p62
      %s64 = ssub.s32 %s26, %s33
      %p65 = scmp.eq.s32.totalorder %s64, 0
      %s67 = sadd.s32 %s66, 1
      %s68 = scalar_select %p65, %s66, %s67
      %p71 = pneg %p65
      %p72 = scmp.eq.s32.totalorder %s18, 1
      %p73 = por %p71, %p72
      %p74 = scmp.ne.s32.totalorder %s66, %s69
      %p75 = scmp.eq.s32.totalorder %s18, 0
      %p76 = por %p74, %p75
      %p77 = scmp.ne.s32.totalorder %s66, %s69
      %p78 = scmp.eq.s32.totalorder %s23, 1
      %p79 = por %p77, %p78
      %p80 = scmp.ne.s32.totalorder %s69, %s70
      %p81 = scmp.eq.s32.totalorder %s23, 0
      %p82 = por %p80, %p81
      %p83 = scmp.ne.s32.totalorder %s69, %s70
      %p84 = scmp.eq.s32.totalorder %s24, 1
      %p85 = por %p83, %p84
      %p87 = scmp.ne.s32.totalorder %s70, %s86
      %p88 = scmp.eq.s32.totalorder %s24, 0
      %p89 = por %p87, %p88
      %s90 = ssub.s32 %s26, %s33
      %p91 = scmp.eq.s32.totalorder %s90, 0
      %s93 = sadd.s32 %s92, 1
      %s94 = scalar_select %p91, %s92, %s93
      %p97 = pneg %p91
      %p98 = scmp.eq.s32.totalorder %s18, 1
      %p99 = por %p97, %p98
      %p100 = scmp.ne.s32.totalorder %s92, %s95
      %p101 = scmp.eq.s32.totalorder %s18, 0
      %p102 = por %p100, %p101
      %p103 = scmp.ne.s32.totalorder %s92, %s95
      %p104 = scmp.eq.s32.totalorder %s23, 1
      %p105 = por %p103, %p104
      %p106 = scmp.ne.s32.totalorder %s95, %s96
      %p107 = scmp.eq.s32.totalorder %s23, 0
      %p108 = por %p106, %p107
      %p109 = scmp.ne.s32.totalorder %s95, %s96
      %p110 = scmp.eq.s32.totalorder %s24, 1
      %p111 = por %p109, %p110
      %p113 = scmp.ne.s32.totalorder %s96, %s112
      %p114 = scmp.eq.s32.totalorder %s24, 0
      %p115 = por %p113, %p114
      %s117 = sadd.s32 %s116, 1
      %p120 = scmp.eq.s32.totalorder %s18, 1
      %p121 = scmp.ne.s32.totalorder %s116, %s118
      %p122 = scmp.eq.s32.totalorder %s18, 0
      %p123 = por %p121, %p122
      %p124 = scmp.ne.s32.totalorder %s116, %s118
      %p125 = scmp.eq.s32.totalorder %s23, 1
      %p126 = por %p124, %p125
      %p127 = scmp.ne.s32.totalorder %s118, %s119
      %p128 = scmp.eq.s32.totalorder %s23, 0
      %p129 = por %p127, %p128
      %p130 = scmp.ne.s32.totalorder %s118, %s119
      %p131 = scmp.eq.s32.totalorder %s24, 1
      %p132 = por %p130, %p131
      %p134 = scmp.ne.s32.totalorder %s119, %s133
      %p135 = scmp.eq.s32.totalorder %s24, 0
      %p136 = por %p134, %p135
      %s137 = ssub.s32 %s25, %s37
      %s138 = ssub.s32 %s26, %s33
      %s139 = sor.u32 %s137, %s138
      %p140 = scmp.eq.s32.totalorder %s139, 0
      %s142 = sadd.s32 %s141, 1
      %s143 = scalar_select %p140, %s141, %s142
      %p146 = pneg %p140
      %p147 = scmp.eq.s32.totalorder %s18, 1
      %p148 = por %p146, %p147
      %p149 = scmp.ne.s32.totalorder %s141, %s144
      %p150 = scmp.eq.s32.totalorder %s18, 0
      %p151 = por %p149, %p150
      %p152 = scmp.ne.s32.totalorder %s141, %s144
      %p153 = scmp.eq.s32.totalorder %s23, 1
      %p154 = por %p152, %p153
      %p155 = scmp.ne.s32.totalorder %s144, %s145
      %p156 = scmp.eq.s32.totalorder %s23, 0
      %p157 = por %p155, %p156
      %p158 = scmp.ne.s32.totalorder %s144, %s145
      %p159 = scmp.eq.s32.totalorder %s24, 1
      %p160 = por %p158, %p159
      %p162 = scmp.ne.s32.totalorder %s145, %s161
      %p163 = scmp.eq.s32.totalorder %s24, 0
      %p164 = por %p162, %p163
      %p165 = scmp.le.s32.totalorder 1, %s18
      %p166 = scmp.lt.s32.totalorder %s18, 3
      %p167 = pnand %p165, %p166
      %p168 = pneg %p167
      // Predicated region
      $region9: #{tpu_custom_call.1} parent=5 // pred_check
        _
      $region10: #{tpu_custom_call.1} parent=5 // pred_check_branch
        %170 = sbr.rel (%p167) target = $region12
      $region11: #{tpu_custom_call.1} parent=5 // pred_region
        %s171 = ssub.s32 %s18, 1
        // Predicated region
        $region13: #{tpu_custom_call.1} parent=11 // pred_check
          %p172 = pneg %p82
        $region14: #{tpu_custom_call.1} parent=11 // pred_check_branch
          %174 = sbr.rel (%p172) target = $region16
        $region15: #{tpu_custom_call.1} parent=11 // pred_region
          %s176 = ssub.s32 512, 512
          %177 = vsyncadd [#allocation7], %s176
          %s178 = smul.addr %s28, 64
          %s179 = scalar_lea.hbm %s1, %s178
          %s180 = sshll.u32 [#allocation6], 4
          %s181 = int_to_ptr.vmem [resolvable:$true] %s180
          %186 = dma.hbm_to_vmem [thread:$0]  %s179, 512, %s181, [#allocation7], 64, 64, 4
        $region16: #{tpu_custom_call.1} parent=11 // pred_fallthru
          _
        // Predicated region
        $region17: #{tpu_custom_call.1} parent=11 // pred_check
          %p187 = pneg %p108
        $region18: #{tpu_custom_call.1} parent=11 // pred_check_branch
          %189 = sbr.rel (%p187) target = $region20
        $region19: #{tpu_custom_call.1} parent=11 // pred_region
          %p190 = scmp.lt.s32.totalorder %s28, 0
          %s191 = scalar_select %p190, %s28, 0
          %s192 = scalar_lea.vmem %s2, %s191
        $region20: #{tpu_custom_call.1} parent=11 // pred_fallthru
          _
        // Predicated region
        $region21: #{tpu_custom_call.1} parent=11 // pred_check
          %p193 = pneg %p129
        $region22: #{tpu_custom_call.1} parent=11 // pred_check_branch
          %195 = sbr.rel (%p193) target = $region24
        $region23: #{tpu_custom_call.1} parent=11 // pred_region
          _
        $region24: #{tpu_custom_call.1} parent=11 // pred_fallthru
          _
      $region12: #{tpu_custom_call.1} parent=5 // pred_fallthru
        _
      %p196 = scmp.lt.s32.totalorder %s18, 2
      // Predicated region
      $region25: #{tpu_custom_call.1} parent=5 // pred_check
        %p197 = pneg %p196
      $region26: #{tpu_custom_call.1} parent=5 // pred_check_branch
        %199 = sbr.rel (%p197) target = $region28
      $region27: #{tpu_custom_call.1} parent=5 // pred_region
        // Predicated region
        $region29: #{tpu_custom_call.1} parent=27 // pred_check
          %p200 = pneg %p50
        $region30: #{tpu_custom_call.1} parent=27 // pred_check_branch
          %202 = sbr.rel (%p200) target = $region32
        $region31: #{tpu_custom_call.1} parent=27 // pred_region
          %s203 = sand.u32 %s40, 1
          %s204 = scalar_lea.sflag [#allocation4], %s203
          %s205 = sand.u32 %s40, 1
          %s206 = smul.addr %s205, 8
          %s207 = scalar_lea.vmem [#allocation3], %s206
          %s209 = ssub.s32 128, 128
          %210 = vsyncadd %s204, %s209
          %s211 = smul.addr %s25, 128
          %s212 = scalar_lea.hbm %s0, %s211
          %s214 = sshll.u32 %s207, 4
          %s215 = int_to_ptr.vmem [resolvable:$true] %s214
          %217 = dma.hbm_to_vmem [thread:$0]  %s212, 128, %s215, %s204
        $region32: #{tpu_custom_call.1} parent=27 // pred_fallthru
          _
      $region28: #{tpu_custom_call.1} parent=5 // pred_fallthru
        _
      %p218 = scmp.le.s32.totalorder 1, %s18
      %p219 = scmp.lt.s32.totalorder %s18, 3
      %p220 = pnand %p218, %p219
      %p221 = pneg %p220
      // Predicated region
      $region33: #{tpu_custom_call.1} parent=5 // pred_check
        _
      $region34: #{tpu_custom_call.1} parent=5 // pred_check_branch
        %223 = sbr.rel (%p220) target = $region36
      $region35: #{tpu_custom_call.1} parent=5 // pred_region
        %s224 = ssub.s32 %s18, 1
        %s225 = sand.u32 %s43, 1
        %s226 = scalar_lea.sflag [#allocation4], %s225
        %s227 = sand.u32 %s43, 1
        %s228 = smul.addr %s227, 8
        %s229 = scalar_lea.vmem [#allocation3], %s228
        // Predicated region
        $region37: #{tpu_custom_call.1} parent=35 // pred_check
          %p230 = pneg %p56
        $region38: #{tpu_custom_call.1} parent=35 // pred_check_branch
          %232 = sbr.rel (%p230) target = $region40
        $region39: #{tpu_custom_call.1} parent=35 // pred_region
          %233 = dma.done %s226, 128
        $region40: #{tpu_custom_call.1} parent=35 // pred_fallthru
          _
        // Predicated region
        $region41: #{tpu_custom_call.1} parent=35 // pred_check
          %p234 = pneg %p82
        $region42: #{tpu_custom_call.1} parent=35 // pred_check_branch
          %236 = sbr.rel (%p234) target = $region44
        $region43: #{tpu_custom_call.1} parent=35 // pred_region
          %237 = dma.done [#allocation7], 512
        $region44: #{tpu_custom_call.1} parent=35 // pred_fallthru
          _
        %s238 = sand.u32 %s43, 1
        %s239 = scalar_lea.sflag [#allocation4], %s238
        %s240 = sand.u32 %s43, 1
        %s241 = smul.addr %s240, 8
        %s242 = scalar_lea.vmem [#allocation3], %s241
        %p243 = pneg %p56
        %p244 = pneg %p53
        %p245 = pneg %p82
        %p246 = pneg %p79
        %p247 = scmp.lt.s32.totalorder %s28, 0
        %s248 = scalar_select %p247, %s28, 0
        %s249 = scalar_lea.vmem %s2, %s248
        %p250 = pneg %p108
        %p251 = pneg %p105
        %p252 = pneg %p129
        %p253 = pneg %p126
        %p254 = pneg %p157
        %p255 = pneg %p154
        %s256 = sand.u32 %s144, 1
        %s257 = scalar_lea.sflag [#allocation5], %s256
        %s258 = sand.u32 %s144, 1
        %s259 = smul.addr %s258, 8
        %s260 = scalar_lea.vmem [#allocation8], %s259
        %p261 = scmp.lt.s32.totalorder %s28, 0
        %s262 = scalar_select %p261, %s28, 0
        %s263 = scalar_lea.vmem %s2, %s262
        %v265 = vld [vmem:[%s229] sm:$0xff]
        %v266 = vpack.c.bf16 %v265, %v265
        %v267 = vld [vmem:[#allocation6] sm:$0xf]
        %v268 = vld [vmem:[#allocation6 + $0x4] sm:$0xf]
        %v269 = vld [vmem:[#allocation6 + $0x8] sm:$0xf]
        %v270 = vld [vmem:[#allocation6 + $0xc] sm:$0xf]
        %v271 = vld [vmem:[%s263] sm:$0x1]
        %v273 = vlaneseq
        %v274 = vshrl.u32 %v273, 7
        %v275 = vsub.s32 0, %v274
        %v276 = vrot.slane %v271, %v275
        %v282 = vunpack.c.l.b16 %v267
        %v283 = vunpack.c.l.b16 %v268
        %v284 = vunpack.c.l.b16 %v269
        %v285 = vunpack.c.l.b16 %v270
        %v286 = vpack.c.b16 %v283, %v282
        %v287 = vpack.c.b16 %v285, %v284
        %vm290 = vcmask 261120
        %v292 = vsel %vm290, %v266, 0
        %294 = vmatprep.subr.bf16.mxu0 0
        %295 = vmatpush1.bf16.msra.mxu0 %v286
        %296 = vmatprep.subr.bf16.mxu0 0
        %297 = vmatpush1.bf16.msra.mxu0 %v287
        %298 = vmatprep.subr.bf16.mxu0 0
        %299 = vmatpush1.bf16.msra.mxu0 0
        %300 = vmatprep.subr.bf16.mxu0 0
        %301 = vmatpush1.bf16.msra.mxu0 0
        %302 = vmatprep.subr.bf16.mxu0 0
        %303 = vmatpush1.bf16.msra.mxu0 0
        %304 = vmatprep.subr.bf16.mxu0 0
        %305 = vmatpush1.bf16.msra.mxu0 0
        %306 = vmatprep.subr.bf16.mxu0 0
        %307 = vmatpush1.bf16.msra.mxu0 0
        %308 = vmatprep.subr.bf16.mxu0 0
        %309 = vmatpush1.bf16.msra.mxu0 0
        %310 = vmatprep.subr.bf16.mxu0 0
        %311 = vmatpush1.bf16.msra.mxu0 0
        %312 = vmatprep.subr.bf16.mxu0 0
        %313 = vmatpush1.bf16.msra.mxu0 0
        %314 = vmatprep.subr.bf16.mxu0 0
        %315 = vmatpush1.bf16.msra.mxu0 0
        %316 = vmatprep.subr.bf16.mxu0 0
        %317 = vmatpush1.bf16.msra.mxu0 0
        %318 = vmatprep.subr.bf16.mxu0 0
        %319 = vmatpush1.bf16.msra.mxu0 0
        %320 = vmatprep.subr.bf16.mxu0 0
        %321 = vmatpush1.bf16.msra.mxu0 0
        %322 = vmatprep.subr.bf16.mxu0 0
        %323 = vmatpush1.bf16.msra.mxu0 0
        %324 = vmatprep.subr.bf16.mxu0 0
        %325 = vmatpush1.bf16.msra.mxu0 0
        %326 = vmatprep.mubr.bf16.mxu0 0
        %327 = vmatmul.mubr.bf16.gmra.mrb[0].mxu0 %v292
        %v328 = vpop.f32.mrb[0].mxu0
        %v329 = vadd.f32 %v276, %v328
        %v330 = vpop.f32.mrb[0].mxu0
        %v331 = vpop.f32.mrb[0].mxu0
        %v332 = vpop.f32.mrb[0].mxu0
        %333 = vdwg.mxu0
        %s334 = scalar_lea.vmem [#allocation6], 16
        %v335 = vld [vmem:[%s334] sm:$0xf]
        %v336 = vld [vmem:[%s334 + $0x4] sm:$0xf]
        %v337 = vld [vmem:[%s334 + $0x8] sm:$0xf]
        %v338 = vld [vmem:[%s334 + $0xc] sm:$0xf]
        %s339 = scalar_lea.vmem %s263, 1
        %v340 = vld [vmem:[%s339] sm:$0x1]
        %v342 = vlaneseq
        %v343 = vshrl.u32 %v342, 7
        %v344 = vsub.s32 0, %v343
        %v345 = vrot.slane %v340, %v344
        %v351 = vunpack.c.l.b16 %v335
        %v352 = vunpack.c.l.b16 %v336
        %v353 = vunpack.c.l.b16 %v337
        %v354 = vunpack.c.l.b16 %v338
        %v355 = vpack.c.b16 %v352, %v351
        %v356 = vpack.c.b16 %v354, %v353
        %359 = vmatprep.subr.bf16.mxu0 0
        %360 = vmatpush1.bf16.msra.mxu0 %v355
        %361 = vmatprep.subr.bf16.mxu0 0
        %362 = vmatpush1.bf16.msra.mxu0 %v356
        %363 = vmatprep.subr.bf16.mxu0 0
        %364 = vmatpush1.bf16.msra.mxu0 0
        %365 = vmatprep.subr.bf16.mxu0 0
        %366 = vmatpush1.bf16.msra.mxu0 0
        %367 = vmatprep.subr.bf16.mxu0 0
        %368 = vmatpush1.bf16.msra.mxu0 0
        %369 = vmatprep.subr.bf16.mxu0 0
        %370 = vmatpush1.bf16.msra.mxu0 0
        %371 = vmatprep.subr.bf16.mxu0 0
        %372 = vmatpush1.bf16.msra.mxu0 0
        %373 = vmatprep.subr.bf16.mxu0 0
        %374 = vmatpush1.bf16.msra.mxu0 0
        %375 = vmatprep.subr.bf16.mxu0 0
        %376 = vmatpush1.bf16.msra.mxu0 0
        %377 = vmatprep.subr.bf16.mxu0 0
        %378 = vmatpush1.bf16.msra.mxu0 0
        %379 = vmatprep.subr.bf16.mxu0 0
        %380 = vmatpush1.bf16.msra.mxu0 0
        %381 = vmatprep.subr.bf16.mxu0 0
        %382 = vmatpush1.bf16.msra.mxu0 0
        %383 = vmatprep.subr.bf16.mxu0 0
        %384 = vmatpush1.bf16.msra.mxu0 0
        %385 = vmatprep.subr.bf16.mxu0 0
        %386 = vmatpush1.bf16.msra.mxu0 0
        %387 = vmatprep.subr.bf16.mxu0 0
        %388 = vmatpush1.bf16.msra.mxu0 0
        %389 = vmatprep.subr.bf16.mxu0 0
        %390 = vmatpush1.bf16.msra.mxu0 0
        %391 = vmatprep.mubr.bf16.mxu0 0
        %392 = vmatmul.mubr.bf16.gmra.mrb[0].mxu0 %v292
        %v393 = vpop.f32.mrb[0].mxu0
        %v394 = vadd.f32 %v345, %v393
        %v395 = vpop.f32.mrb[0].mxu0
        %v396 = vpop.f32.mrb[0].mxu0
        %v397 = vpop.f32.mrb[0].mxu0
        %398 = vdwg.mxu0
        %s399 = sld [smem:[#allocation2]]
        %v400 = vstv %s399
        %v401 = vmul.f32 %v400, %v329
        %v402 = vxor.u32 %v401, 2147483648
        %v403 = vmul.f32 %v402, 1.442695
        %v404 = vpow.pop %v403
        %v405 = vadd.f32 %v404, 1.0
        %v406 = vrcp.pop %v405
        %v407 = vmul.f32 1.0, %v406
        %v408 = vmul.f32 %v329, %v407
        %v409 = vmul.f32 %v408, %v394
        %410 = vst.msk [vmem:[%s260] sm:$0xff] %vm290, %v409
        %s411 = sand.u32 %s144, 1
        %s412 = scalar_lea.sflag [#allocation5], %s411
        %s413 = sand.u32 %s144, 1
        %s414 = smul.addr %s413, 8
        %s415 = scalar_lea.vmem [#allocation8], %s414
        // Predicated region
        $region45: #{tpu_custom_call.1} parent=35 // pred_check
          %p416 = pneg %p154
        $region46: #{tpu_custom_call.1} parent=35 // pred_check_branch
          %418 = sbr.rel (%p416) target = $region48
        $region47: #{tpu_custom_call.1} parent=35 // pred_region
          %s420 = ssub.s32 128, 128
          %421 = vsyncadd %s412, %s420
          %s422 = sadd.s32 %s28, %s27
          %s423 = smul.addr %s422, 128
          %s424 = scalar_lea.hbm %s4, %s423
          %s426 = sshll.u32 %s415, 4
          %s427 = int_to_ptr.vmem [resolvable:$true] %s426
          %429 = dma.vmem_to_hbm [thread:$0]  %s427, 128, %s424, %s412
        $region48: #{tpu_custom_call.1} parent=35 // pred_fallthru
          _
      $region36: #{tpu_custom_call.1} parent=5 // pred_fallthru
        _
      %p430 = scmp.le.s32.totalorder 2, %s18
      // Predicated region
      $region49: #{tpu_custom_call.1} parent=5 // pred_check
        %p431 = pneg %p430
      $region50: #{tpu_custom_call.1} parent=5 // pred_check_branch
        %433 = sbr.rel (%p431) target = $region52
      $region51: #{tpu_custom_call.1} parent=5 // pred_region
        %s434 = ssub.s32 %s18, 2
        // Predicated region
        $region53: #{tpu_custom_call.1} parent=51 // pred_check
          %p435 = pneg %p160
        $region54: #{tpu_custom_call.1} parent=51 // pred_check_branch
          %437 = sbr.rel (%p435) target = $region56
        $region55: #{tpu_custom_call.1} parent=51 // pred_region
          %s438 = sand.u32 %s145, 1
          %s439 = scalar_lea.sflag [#allocation5], %s438
          %s440 = sand.u32 %s145, 1
          %s441 = smul.addr %s440, 8
          %s442 = scalar_lea.vmem [#allocation8], %s441
          %443 = dma.done %s439, 128
        $region56: #{tpu_custom_call.1} parent=51 // pred_fallthru
          _
      $region52: #{tpu_custom_call.1} parent=5 // pred_fallthru
        _
    $region6: #{tpu_custom_call.1} parent=1 // loop_footer
      %s22 = sadd.s32 1, %s18
    $region7: #{tpu_custom_call.1} parent=1 // loop_footer_branch
      %17 = sbr.rel target = $region3
    $region8: #{tpu_custom_call.1} parent=1 // loop_exit
      _
    %444 = vsyncpa [#allocation4], 1
    %s445 = scalar_lea.sflag [#allocation4], 1
    %446 = vsyncpa %s445, 1
    %447 = vsyncpa [#allocation7], 1
    %448 = vsyncpa [#allocation5], 1
    %s449 = scalar_lea.sflag [#allocation5], 1
    %450 = vsyncpa %s449, 1

</llo_original>
